<compile_context>
chip_gen: v5e
topology: v5e:2x2
jax: 0.10.0
libtpu: 0.0.40
codegen_flags: <defaults>
</compile_context>

<pallas_src>
import jax
import jax.numpy as jnp
from jax.experimental import pallas as pl
from jax.experimental.pallas import tpu as pltpu


def _encode_kernel(mu_ref, logvar_ref, eps_ref, z_ref, kl_ref):
    mu = mu_ref[...]            # (Tb, NZ) f32
    logvar = logvar_ref[...]    # (Tb, NZ) f32

    # reparameterize: z = mu + eps * exp(0.5 * logvar)   (broadcast over samples)
    std = jnp.exp(0.5 * logvar)                           # (Tb, NZ)
    z_ref[...] = mu[None, :, :] + eps_ref[...] * std[None, :, :]

    # KL = 0.5 * sum(mu^2 + exp(logvar) - logvar - 1, axis=1)
    # Independent of the sample axis -> compute only on the first S step.
    @pl.when(pl.program_id(1) == 0)
    def _():
        var = std * std                                   # = exp(logvar), no 2nd EUP exp
        kl_row = 0.5 * jnp.sum(mu * mu + var - logvar - 1.0, axis=1)   # (Tb,)
        kl_ref[...] = kl_row[None, :]                     # lane-major (1, Tb)


def _largest_divisor(n, cap, multiple):
    """Largest d | n with d <= cap and d % multiple == 0; falls back to n (full extent)."""
    for d in range(min(cap, n), 0, -1):
        if n % d == 0 and d % multiple == 0:
            return d
    return n


def _choose_tiles(S, B, NZ, target_tile_bytes=2 * 1024 * 1024):
    """Pick (Ts, Tb) so a (Ts, Tb, NZ) f32 tile is ~target_tile_bytes (v7x-safe)."""
    # Batch tile: full B if small, else a multiple of 8 (sublane) dividing B.
    tb = B if B <= 256 else _largest_divisor(B, 256, 8)
    # Sample tile: fill the per-tile budget with sample rows.
    rows_budget = max(1, target_tile_bytes // max(1, tb * NZ * 4))
    ts = S if S <= rows_budget else _largest_divisor(S, rows_budget, 1)
    return ts, tb


def gaussian_encode(mu, logvar, eps):
    """Pallas implementation of GaussianEncoderBase.encode given (mu, logvar).

    mu, logvar: (B, NZ) float32
    eps:        (S, B, NZ) float32  (standard-normal noise)
    returns z: (S, B, NZ), KL: (B,)
    """
    B, NZ = mu.shape
    S = eps.shape[0]

    ts, tb = _choose_tiles(S, B, NZ)
    n_b = B // tb
    n_s = S // ts

    z, kl2d = pl.pallas_call(
        _encode_kernel,
        grid=(n_b, n_s),
        out_shape=(
            jax.ShapeDtypeStruct((S, B, NZ), mu.dtype),
            jax.ShapeDtypeStruct((n_b, tb), jnp.float32),
        ),
        in_specs=[
            pl.BlockSpec((tb, NZ), lambda b, s: (b, 0)),          # mu
            pl.BlockSpec((tb, NZ), lambda b, s: (b, 0)),          # logvar
            pl.BlockSpec((ts, tb, NZ), lambda b, s: (s, b, 0)),   # eps
        ],
        out_specs=(
            pl.BlockSpec((ts, tb, NZ), lambda b, s: (s, b, 0)),   # z
            pl.BlockSpec((1, tb), lambda b, s: (b, 0)),           # KL (resident over s)
        ),
        compiler_params=pltpu.CompilerParams(
            dimension_semantics=("parallel", "arbitrary"),
            vmem_limit_bytes=32 * 1024 * 1024,
        ),
    )(mu, logvar, eps)

    return z, kl2d.reshape(B)


def _reference_encode(mu, logvar, eps):
    std = jnp.exp(0.5 * logvar)
    z = mu[None] + eps * std[None]
    kl = 0.5 * jnp.sum(mu ** 2 + jnp.exp(logvar) - logvar - 1.0, axis=1)
    return z, kl


if __name__ == "__main__":
    key = jax.random.PRNGKey(0)
    k_mu, k_lv, k_eps = jax.random.split(key, 3)

    # nz = 128 keeps the latent (lane) axis fully dense on TPU.
    B, NZ, NSAMPLES = 8, 128, 4

    mu = jax.random.normal(k_mu, (B, NZ), dtype=jnp.float32)
    logvar = 0.1 * jax.random.normal(k_lv, (B, NZ), dtype=jnp.float32)
    # torch's .normal_() noise, made deterministic via jax.random here.
    eps = jax.random.normal(k_eps, (NSAMPLES, B, NZ), dtype=jnp.float32)

    z, kl = gaussian_encode(mu, logvar, eps)
    jax.block_until_ready((z, kl))

    z_ref, kl_ref = _reference_encode(mu, logvar, eps)
    assert z.shape == (NSAMPLES, B, NZ)
    assert kl.shape == (B,)
    assert jnp.allclose(z, z_ref, atol=1e-5, rtol=1e-5)
    assert jnp.allclose(kl, kl_ref, atol=1e-5, rtol=1e-5)

    print("KERNEL_OK")
</pallas_src>

<mosaic_0001>
module attributes {stable_mosaic.version = 11 : i64} {
  func.func @_encode_kernel(%arg0: i32, %arg1: i32, %arg2: memref<8x128xf32, #tpu.memory_space<vmem>>, %arg3: memref<8x128xf32, #tpu.memory_space<vmem>>, %arg4: memref<4x8x128xf32, #tpu.memory_space<vmem>>, %arg5: memref<4x8x128xf32, #tpu.memory_space<vmem>>, %arg6: memref<1x8xf32, #tpu.memory_space<vmem>>) attributes {dimension_semantics = [#tpu.dimension_semantics<parallel>, #tpu.dimension_semantics<arbitrary>], iteration_bounds = array<i64: 1, 1>, scalar_prefetch = 0 : i64, scratch_operands = 0 : i64, tpu.core_type = #tpu.core_type<tc>, window_params = [{transform_indices = @transform_0, window_bounds = array<i64: 8, 128>}, {transform_indices = @transform_1, window_bounds = array<i64: 8, 128>}, {transform_indices = @transform_2, window_bounds = array<i64: 4, 8, 128>}, {transform_indices = @transform_3, window_bounds = array<i64: 4, 8, 128>}, {transform_indices = @transform_4, window_bounds = array<i64: 1, 8>}]} {
    %c0 = arith.constant 0 : index
    %c0_0 = arith.constant 0 : index
    %0 = vector.load %arg2[%c0, %c0_0] : memref<8x128xf32, #tpu.memory_space<vmem>>, vector<8x128xf32>
    %c0_1 = arith.constant 0 : index
    %c0_2 = arith.constant 0 : index
    %1 = vector.load %arg3[%c0_1, %c0_2] : memref<8x128xf32, #tpu.memory_space<vmem>>, vector<8x128xf32>
    %cst = arith.constant 5.000000e-01 : f32
    %2 = vector.broadcast %cst : f32 to vector<8x128xf32>
    %3 = arith.mulf %2, %1 : vector<8x128xf32>
    %4 = math.exp %3 : vector<8x128xf32>
    %5 = vector.shape_cast %0 : vector<8x128xf32> to vector<1x8x128xf32>
    %c0_3 = arith.constant 0 : index
    %c0_4 = arith.constant 0 : index
    %c0_5 = arith.constant 0 : index
    %6 = vector.load %arg4[%c0_3, %c0_4, %c0_5] : memref<4x8x128xf32, #tpu.memory_space<vmem>>, vector<4x8x128xf32>
    %7 = vector.shape_cast %4 : vector<8x128xf32> to vector<1x8x128xf32>
    %8 = vector.broadcast %7 : vector<1x8x128xf32> to vector<4x8x128xf32>
    %9 = arith.mulf %6, %8 : vector<4x8x128xf32>
    %10 = vector.broadcast %5 : vector<1x8x128xf32> to vector<4x8x128xf32>
    %11 = arith.addf %10, %9 : vector<4x8x128xf32>
    %c0_6 = arith.constant 0 : index
    %c0_7 = arith.constant 0 : index
    %c0_8 = arith.constant 0 : index
    %12 = vector.load %arg5[%c0_6, %c0_7, %c0_8] : memref<4x8x128xf32, #tpu.memory_space<vmem>>, vector<4x8x128xf32>
    tpu.vector_store %arg5[%c0_6, %c0_7, %c0_8], %11 {strides = array<i32>} : memref<4x8x128xf32, #tpu.memory_space<vmem>>, vector<4x8x128xf32>,
    %c0_i32 = arith.constant 0 : i32
    %13 = arith.cmpi eq, %arg1, %c0_i32 : i32
    %14 = arith.extui %13 : i1 to i32
    %c0_i32_9 = arith.constant 0 : i32
    %15 = arith.cmpi ne, %14, %c0_i32_9 : i32
    scf.if %15 {
      %16 = arith.mulf %4, %4 : vector<8x128xf32>
      %17 = arith.mulf %0, %0 : vector<8x128xf32>
      %18 = arith.addf %17, %16 : vector<8x128xf32>
      %19 = arith.subf %18, %1 : vector<8x128xf32>
      %cst_10 = arith.constant 1.000000e+00 : f32
      %20 = vector.broadcast %cst_10 : f32 to vector<8x128xf32>
      %21 = arith.subf %19, %20 : vector<8x128xf32>
      %cst_11 = arith.constant dense<0.000000e+00> : vector<8xf32>
      %22 = vector.multi_reduction <add>, %21, %cst_11 [1] : vector<8x128xf32> to vector<8xf32>
      %cst_12 = arith.constant 5.000000e-01 : f32
      %23 = vector.broadcast %cst_12 : f32 to vector<8xf32>
      %24 = arith.mulf %23, %22 : vector<8xf32>
      %25 = vector.shape_cast %24 : vector<8xf32> to vector<1x8xf32>
      %c0_13 = arith.constant 0 : index
      %c0_14 = arith.constant 0 : index
      %26 = vector.load %arg6[%c0_13, %c0_14] : memref<1x8xf32, #tpu.memory_space<vmem>>, vector<1x8xf32>
      tpu.vector_store %arg6[%c0_13, %c0_14], %25 {strides = array<i32>} : memref<1x8xf32, #tpu.memory_space<vmem>>, vector<1x8xf32>,
    } else {
    }
    return
  }
  func.func @transform_0(%arg0: i32, %arg1: i32) -> (i32, i32) {
    %c0_i32 = arith.constant 0 : i32
    %c0_i32_0 = arith.constant 0 : i32
    return %arg0, %c0_i32 : i32, i32
  }
  func.func @transform_1(%arg0: i32, %arg1: i32) -> (i32, i32) {
    %c0_i32 = arith.constant 0 : i32
    %c0_i32_0 = arith.constant 0 : i32
    return %arg0, %c0_i32 : i32, i32
  }
  func.func @transform_2(%arg0: i32, %arg1: i32) -> (i32, i32, i32) {
    %c0_i32 = arith.constant 0 : i32
    %c0_i32_0 = arith.constant 0 : i32
    return %arg1, %arg0, %c0_i32 : i32, i32, i32
  }
  func.func @transform_3(%arg0: i32, %arg1: i32) -> (i32, i32, i32) {
    %c0_i32 = arith.constant 0 : i32
    %c0_i32_0 = arith.constant 0 : i32
    return %arg1, %arg0, %c0_i32 : i32, i32, i32
  }
  func.func @transform_4(%arg0: i32, %arg1: i32) -> (i32, i32) {
    %c0_i32 = arith.constant 0 : i32
    %c0_i32_0 = arith.constant 0 : i32
    return %arg0, %c0_i32 : i32, i32
  }
}

</mosaic_0001>

<llo_original>
// kernel: tpu_custom_call.1
$region0: #{tpu_custom_call.1}
  #allocation0 [shape = 'u32[]', space=smem, size = 0x4, offset = 0x4, fixed_abs, tag = 'smem constant byte address 0x4 - core index']
  #allocation1 [shape = 'u32[72,128]{1,0:T(1,128)}', space=vmem, size = 0x9000, scoped, tag = 'internal scratch']
  %s0 = inlined_call_operand.hbm [shape: f32[8,128], index: 0, kind: input, shape index: {}]
  %s1 = inlined_call_operand.hbm [shape: f32[8,128], index: 1, kind: input, shape index: {}]
  %s2 = inlined_call_operand.hbm [shape: f32[4,8,128], index: 2, kind: input, shape index: {}]
  %s3 = inlined_call_operand.hbm [shape: f32[4,8,128], index: 3, kind: output, shape index: {0}]
  %s4 = inlined_call_operand.hbm [shape: f32[1,8], index: 4, kind: output, shape index: {1}]
  %5 = xla_tuple %s3, %s4
  %s6 = sld [smem:[#allocation0]]
  $region46: #{tpu_custom_call.1} parent=0
    _
  %s8 = ssub.s32 1, %s6
  %s9 = scalar_select 0, %s8, %s6
  $region1: #{tpu_custom_call.1} parent=0
    #allocation2 [shape = 'u8[4096]{0}', space=vmem, size = 0x1000, scoped, tag = 'input window, operand 0, single buffered']
    #allocation3 [shape = 's32[1]{0}', space=sflag, size = 0x4, scoped, tag = 'scoped memory for tpu_custom_call.1']
    #allocation4 [shape = 's32[1]{0}', space=sflag, size = 0x4, scoped, tag = 'scoped memory for tpu_custom_call.1']
    #allocation5 [shape = 'u8[4096]{0}', space=vmem, size = 0x1000, scoped, tag = 'input window, operand 1, single buffered']
    #allocation6 [shape = 's32[1]{0}', space=sflag, size = 0x4, scoped, tag = 'scoped memory for tpu_custom_call.1']
    #allocation7 [shape = 'u8[16384]{0}', space=vmem, size = 0x4000, scoped, tag = 'input window, operand 2, single buffered']
    #allocation8 [shape = 'u8[16384]{0}', space=vmem, size = 0x4000, scoped, tag = 'output window, operand 0, single buffered']
    #allocation9 [shape = 'u8[512]{0}', space=vmem, size = 0x400, scoped, tag = 'output window, operand 1, single buffered']
    #allocation10 [shape = 's32[1]{0}', space=sflag, size = 0x4, scoped, tag = 'scoped memory for tpu_custom_call.1']
    %10 = vsyncpa [#allocation3], 0
    %11 = vsyncpa [#allocation6], 0
    %12 = vsyncpa [#allocation4], 0
    %13 = vsyncpa [#allocation10], 0
    // Predicated region
    $region2: #{tpu_custom_call.1} parent=1 // pred_check
      _
    $region3: #{tpu_custom_call.1} parent=1 // pred_check_branch
      %15 = sbr.rel (0) target = $region5
    $region4: #{tpu_custom_call.1} parent=1 // pred_region
      %17 = vsyncadd [#allocation3], 0
      %s19 = sshll.u32 %s0, 4
      %s20 = int_to_ptr.hbm [resolvable:$true] %s19
      %s21 = sshll.u32 [#allocation2], 4
      %s22 = int_to_ptr.vmem [resolvable:$true] %s21
      %24 = dma.hbm_to_vmem [thread:$0]  %s20, 128, %s22, [#allocation3]
    $region5: #{tpu_custom_call.1} parent=1 // pred_fallthru
      _
    // Predicated region
    $region6: #{tpu_custom_call.1} parent=1 // pred_check
      _
    $region7: #{tpu_custom_call.1} parent=1 // pred_check_branch
      %26 = sbr.rel (0) target = $region9
    $region8: #{tpu_custom_call.1} parent=1 // pred_region
      %28 = vsyncadd [#allocation6], 0
      %s30 = sshll.u32 %s1, 4
      %s31 = int_to_ptr.hbm [resolvable:$true] %s30
      %s32 = sshll.u32 [#allocation5], 4
      %s33 = int_to_ptr.vmem [resolvable:$true] %s32
      %35 = dma.hbm_to_vmem [thread:$0]  %s31, 128, %s33, [#allocation6]
    $region9: #{tpu_custom_call.1} parent=1 // pred_fallthru
      _
    // Predicated region
    $region10: #{tpu_custom_call.1} parent=1 // pred_check
      _
    $region11: #{tpu_custom_call.1} parent=1 // pred_check_branch
      %37 = sbr.rel (0) target = $region13
    $region12: #{tpu_custom_call.1} parent=1 // pred_region
      %39 = vsyncadd [#allocation6], 0
      %s40 = sshll.u32 %s2, 4
      %s41 = int_to_ptr.hbm [resolvable:$true] %s40
      %s42 = sshll.u32 [#allocation7], 4
      %s43 = int_to_ptr.vmem [resolvable:$true] %s42
      %48 = dma.hbm_to_vmem [thread:$0]  %s41, 512, %s43, [#allocation6], 128, 128, 8
    $region13: #{tpu_custom_call.1} parent=1 // pred_fallthru
      _
    // Predicated region
    $region14: #{tpu_custom_call.1} parent=1 // pred_check
      _
    $region15: #{tpu_custom_call.1} parent=1 // pred_check_branch
      %50 = sbr.rel (0) target = $region17
    $region16: #{tpu_custom_call.1} parent=1 // pred_region
      %52 = dma.done [#allocation3], 128
    $region17: #{tpu_custom_call.1} parent=1 // pred_fallthru
      _
    // Predicated region
    $region18: #{tpu_custom_call.1} parent=1 // pred_check
      _
    $region19: #{tpu_custom_call.1} parent=1 // pred_check_branch
      %54 = sbr.rel (0) target = $region21
    $region20: #{tpu_custom_call.1} parent=1 // pred_region
      %56 = dma.done [#allocation6], 128
    $region21: #{tpu_custom_call.1} parent=1 // pred_fallthru
      _
    // Predicated region
    $region22: #{tpu_custom_call.1} parent=1 // pred_check
      _
    $region23: #{tpu_custom_call.1} parent=1 // pred_check_branch
      %58 = sbr.rel (0) target = $region25
    $region24: #{tpu_custom_call.1} parent=1 // pred_region
      %60 = dma.done [#allocation6], 512
    $region25: #{tpu_custom_call.1} parent=1 // pred_fallthru
      _
    %v61 = vld [vmem:[#allocation2] sm:$0xff]
    %v62 = vld [vmem:[#allocation5] sm:$0xff]
    %v63 = vmul.f32 %v62, 0.5
    %v64 = vmul.f32 %v63, 1.442695
    %v65 = vpow.pop %v64
    %v66 = vld [vmem:[#allocation7] sm:$0xff]
    %v67 = vld [vmem:[#allocation7 + $0x8] sm:$0xff]
    %v68 = vld [vmem:[#allocation7 + $0x10] sm:$0xff]
    %v69 = vld [vmem:[#allocation7 + $0x18] sm:$0xff]
    %v70 = vmul.f32 %v66, %v65
    %v71 = vmul.f32 %v67, %v65
    %v72 = vmul.f32 %v68, %v65
    %v73 = vmul.f32 %v69, %v65
    %v74 = vadd.f32 %v61, %v70
    %v75 = vadd.f32 %v61, %v71
    %v76 = vadd.f32 %v61, %v72
    %v77 = vadd.f32 %v61, %v73
    %78 = vst [vmem:[#allocation8] sm:$0xff] %v74
    %79 = vst [vmem:[#allocation8 + $0x8] sm:$0xff] %v75
    %80 = vst [vmem:[#allocation8 + $0x10] sm:$0xff] %v76
    %81 = vst [vmem:[#allocation8 + $0x18] sm:$0xff] %v77
    %p82 = scmp.eq.s32.totalorder 0, 0
    // Predicated region
    $region26: #{tpu_custom_call.1} parent=1 // pred_check
      %p83 = pneg %p82
    $region27: #{tpu_custom_call.1} parent=1 // pred_check_branch
      %85 = sbr.rel (%p83) target = $region29
    $region28: #{tpu_custom_call.1} parent=1 // pred_region
      %v86 = vmul.f32 %v65, %v65
      %v87 = vmul.f32 %v61, %v61
      %v88 = vadd.f32 %v87, %v86
      %v89 = vsub.f32 %v88, %v62
      %v90 = vsub.f32 %v89, 1.0
      %91 = vadd.xlane.f32.xlu0 %v90
      %v92 = vpop.xlane.xlu0 %91
      %v93 = vmul.f32 %v92, 0.5
      %v95 = vlaneseq
      %v96 = vand.u32 %v95, 127
      %v97 = vperm.slane %v93, %v96
      %vm99 = vcmask 57344
      %100 = vst.msk [vmem:[#allocation9] sm:$0x1] %vm99, %v97
    $region29: #{tpu_custom_call.1} parent=1 // pred_fallthru
      _
    // Predicated region
    $region30: #{tpu_custom_call.1} parent=1 // pred_check
      _
    $region31: #{tpu_custom_call.1} parent=1 // pred_check_branch
      %102 = sbr.rel (0) target = $region33
    $region32: #{tpu_custom_call.1} parent=1 // pred_region
      %104 = vsyncadd [#allocation4], 0
      %s105 = sshll.u32 [#allocation8], 4
      %s106 = int_to_ptr.vmem [resolvable:$true] %s105
      %s107 = sshll.u32 %s3, 4
      %s108 = int_to_ptr.hbm [resolvable:$true] %s107
      %113 = dma.vmem_to_hbm [thread:$0]  %s106, 512, %s108, [#allocation4], 128, 128, 8
    $region33: #{tpu_custom_call.1} parent=1 // pred_fallthru
      _
    // Predicated region
    $region34: #{tpu_custom_call.1} parent=1 // pred_check
      _
    $region35: #{tpu_custom_call.1} parent=1 // pred_check_branch
      %115 = sbr.rel (0) target = $region37
    $region36: #{tpu_custom_call.1} parent=1 // pred_region
      %117 = vsyncadd [#allocation10], 0
      %s119 = sshll.u32 [#allocation9], 4
      %s120 = int_to_ptr.vmem [resolvable:$true] %s119
      %s121 = sshll.u32 %s4, 4
      %s122 = int_to_ptr.hbm [resolvable:$true] %s121
      %124 = dma.vmem_to_hbm [thread:$0]  %s120, 16, %s122, [#allocation10]
    $region37: #{tpu_custom_call.1} parent=1 // pred_fallthru
      _
    // Predicated region
    $region38: #{tpu_custom_call.1} parent=1 // pred_check
      _
    $region39: #{tpu_custom_call.1} parent=1 // pred_check_branch
      %126 = sbr.rel (0) target = $region41
    $region40: #{tpu_custom_call.1} parent=1 // pred_region
      %128 = dma.done [#allocation4], 512
    $region41: #{tpu_custom_call.1} parent=1 // pred_fallthru
      _
    // Predicated region
    $region42: #{tpu_custom_call.1} parent=1 // pred_check
      _
    $region43: #{tpu_custom_call.1} parent=1 // pred_check_branch
      %130 = sbr.rel (0) target = $region45
    $region44: #{tpu_custom_call.1} parent=1 // pred_region
      %132 = dma.done [#allocation10], 16
    $region45: #{tpu_custom_call.1} parent=1 // pred_fallthru
      _
    %133 = vsyncpa [#allocation3], 1
    %134 = vsyncpa [#allocation6], 1
    %135 = vsyncpa [#allocation4], 1
    %136 = vsyncpa [#allocation10], 1

</llo_original>
